<compile_context>
chip_gen: v7x
topology: tpu7x:2x2x1
jax: 0.10.0
libtpu: 0.0.40
codegen_flags: <defaults>
</compile_context>

<pallas_src>
import functools

import jax
import jax.numpy as jnp
from jax.experimental import pallas as pl
from jax.experimental.pallas import tpu as pltpu

_MIB = 1024 * 1024


def _round_up(x, m):
    return (x + m - 1) // m * m


def _hw_tile_config():
    """(tk, tn, vmem_limit_bytes) chosen per TPU generation, with a safe fallback."""
    # Fallback is safe on v5e/v6e/v7x: 2048x1024 bf16 weight block = 4 MiB,
    # 8 MiB double-buffered, well under a 40 MiB scoped-VMEM limit.
    tk, tn, vmem_limit = 2048, 1024, 40 * _MIB
    try:
        info = pltpu.get_tpu_info()
        vmem_phys = int(getattr(info, "vmem_capacity_bytes", 128 * _MIB))
        if vmem_phys <= 96 * _MIB:
            # v7x: 64 MiB physical VMEM per TC, ~3.2 TB/s HBM -> biggest blocks win.
            tk, tn, vmem_limit = 2048, 2048, 44 * _MIB
        else:
            # v5e/v6e: 128 MiB physical VMEM.
            tk, tn, vmem_limit = 2048, 1024, 40 * _MIB
    except Exception:
        pass
    return tk, tn, vmem_limit


def prepare_encoder(position_weight, *, compute_dtype=jnp.bfloat16):
    """Pad + cast the constant projection weight ONCE (off the per-call hot path)."""
    K, N = position_weight.shape
    tk0, tn0, vmem_limit = _hw_tile_config()

    k128 = _round_up(K, 128)
    n128 = _round_up(N, 128)

    tk = min(tk0, k128)
    tn = min(tn0, n128)
    # Keep >= 2 parallel N tiles for megacore (v7x) when it costs zero padding.
    if tn == n128 and n128 >= 256 and n128 % 256 == 0:
        tn = n128 // 2

    K_pad = _round_up(K, tk)
    N_pad = _round_up(N, tn)

    w_p = jnp.zeros((K_pad, N_pad), compute_dtype)
    w_p = w_p.at[:K, :N].set(position_weight.astype(compute_dtype))
    w_p = jax.block_until_ready(w_p)

    return dict(
        w=w_p, K=K, N=N, K_pad=K_pad, N_pad=N_pad, tk=tk, tn=tn,
        vmem_limit=vmem_limit, compute_dtype=compute_dtype,
    )


def _encoder_single_block_kernel(x_ref, w_ref, o_ref):
    # Whole problem in one VMEM block: matmul + hard_quantize.
    acc = jnp.dot(x_ref[...], w_ref[...], preferred_element_type=jnp.float32)
    o_ref[...] = jnp.where(acc > 0, jnp.float32(1.0), jnp.float32(-1.0)).astype(
        o_ref.dtype
    )


def _encoder_tiled_kernel(tk, x_resident, x_ref, w_ref, o_ref):
    # Accumulate straight into the resident f32 output block (no scratch needed);
    # hard-quantize in place on the last K step.
    k = pl.program_id(1)

    @pl.when(k == 0)
    def _init():
        o_ref[...] = jnp.zeros_like(o_ref)

    if x_resident:
        # x is a single resident (B_pad, K_pad) block; slice the current K tile.
        x_blk = x_ref[:, pl.ds(pl.multiple_of(k * tk, tk), tk)]
    else:
        x_blk = x_ref[...]

    o_ref[...] += jnp.dot(x_blk, w_ref[...], preferred_element_type=jnp.float32)

    @pl.when(k == pl.num_programs(1) - 1)
    def _finalize():
        # torchhd.hard_quantize: +1 where > 0, else -1 (exact zeros -> -1).
        o_ref[...] = jnp.where(
            o_ref[...] > 0, jnp.float32(1.0), jnp.float32(-1.0)
        ).astype(o_ref.dtype)


def encoder_forward(x_nchw, enc, *, out_dtype=jnp.float32):
    """x_nchw: (B, C, H, W); enc: output of prepare_encoder for weight (K, N)."""
    w_p = enc["w"]
    K, N = enc["K"], enc["N"]
    K_pad, N_pad = enc["K_pad"], enc["N_pad"]
    tk, tn = enc["tk"], enc["tn"]
    cdt = enc["compute_dtype"]
    vmem_limit = enc["vmem_limit"]

    B = x_nchw.shape[0]
    x_flat = x_nchw.reshape(B, -1)  # same element ordering as torch.nn.Flatten
    assert x_flat.shape[1] == K

    B_pad = max(_round_up(B, 16), 16)  # fill bf16 sublanes / MXU rows
    x_p = jnp.zeros((B_pad, K_pad), cdt).at[:B, :K].set(x_flat.astype(cdt))

    # ---- tiny-problem fast path: one full-array block, no pipelined grid ----
    total_bytes = (B_pad * K_pad + K_pad * N_pad) * 2 + B_pad * N_pad * 4
    if total_bytes <= 4 * _MIB:
        out_p = pl.pallas_call(
            _encoder_single_block_kernel,
            out_shape=jax.ShapeDtypeStruct((B_pad, N_pad), jnp.float32),
        )(x_p, w_p)
        return out_p[:B, :N].astype(out_dtype)

    # ---- tiled, weight-streaming path (memory-bound on the weight stream) ----
    w_bytes = 2 * tk * tn * jnp.dtype(cdt).itemsize          # double-buffered
    o_bytes = 2 * B_pad * tn * 4                              # resident f32 output
    x_bytes_resident = 2 * B_pad * K_pad * jnp.dtype(cdt).itemsize
    x_resident = (x_bytes_resident + w_bytes + o_bytes) <= (vmem_limit - 4 * _MIB)

    if x_resident:
        x_spec = pl.BlockSpec((B_pad, K_pad), lambda j, k: (0, 0))
        x_bytes = x_bytes_resident
    else:
        x_spec = pl.BlockSpec((B_pad, tk), lambda j, k: (0, k))
        x_bytes = 2 * B_pad * tk * jnp.dtype(cdt).itemsize

    assert x_bytes + w_bytes + o_bytes <= vmem_limit, (
        "working set exceeds the VMEM budget; reduce the batch per call or tiles"
    )

    grid = (N_pad // tn, K_pad // tk)  # reduction (K) axis last
    kernel = functools.partial(_encoder_tiled_kernel, tk, x_resident)

    out_p = pl.pallas_call(
        kernel,
        out_shape=jax.ShapeDtypeStruct((B_pad, N_pad), jnp.float32),
        grid_spec=pltpu.PrefetchScalarGridSpec(
            num_scalar_prefetch=0,
            grid=grid,
            in_specs=[
                x_spec,
                # weight: streamed tile-by-tile over (K, N)
                pl.BlockSpec((tk, tn), lambda j, k: (k, j)),
            ],
            # output block constant across K -> stays resident, written once per j
            out_specs=pl.BlockSpec((B_pad, tn), lambda j, k: (0, j)),
        ),
        compiler_params=pltpu.CompilerParams(
            dimension_semantics=("parallel", "arbitrary"),
            vmem_limit_bytes=vmem_limit,
        ),
    )(x_p, w_p)

    return out_p[:B, :N].astype(out_dtype)


def _make_hrr_weight(key, K, N):
    # embeddings.Random(K, N, vsa='HRR') -> weight ~ N(0, 1/N), shape (K, N).
    w = jax.random.normal(key, (K, N), dtype=jnp.float32)
    return w / jnp.sqrt(jnp.float32(N))


def _check(out, x, position_weight):
    B = x.shape[0]
    N = position_weight.shape[1]
    assert out.shape == (B, N)
    assert bool(jnp.all(jnp.abs(out) == 1.0))

    # Reference along the same bf16-input path (signs can flip only for results
    # essentially at zero -- intentional accuracy trade-off of the bf16 stream).
    x_bf = x.reshape(B, -1).astype(jnp.bfloat16).astype(jnp.float32)
    w_bf = position_weight.astype(jnp.bfloat16).astype(jnp.float32)
    ref = jnp.where(x_bf @ w_bf > 0, 1.0, -1.0)
    agree = float(jnp.mean((out == ref).astype(jnp.float32)))
    assert agree >= 0.995, f"sign agreement too low: {agree}"

    # Soft check against the pure-f32 reference as well.
    ref_f32 = jnp.where(x.reshape(B, -1) @ position_weight > 0, 1.0, -1.0)
    agree_f32 = float(jnp.mean((out == ref_f32).astype(jnp.float32)))
    assert agree_f32 >= 0.97, f"f32-reference agreement too low: {agree_f32}"


if __name__ == "__main__":
    key = jax.random.PRNGKey(0)
    k1, k2, k3, k4 = jax.random.split(key, 4)

    # --- Case 1: small shapes consistent with the module (single-block path) ---
    B, C, H, W = 2, 1, 16, 16           # size = 16 -> K = size*size = 256
    out_features = 512                   # hypervector dimension
    x = jax.random.uniform(k1, (B, C, H, W), dtype=jnp.float32)   # NCHW like PyTorch
    w = _make_hrr_weight(k2, C * H * W, out_features)
    # TODO(synk): embeddings.Level / torchhd.bind / multiset / ngrams paths
    # (Record_based / ngrams) are dead code for MODEL='Random_projection'.
    enc = prepare_encoder(w)
    out = jax.block_until_ready(encoder_forward(x, enc))
    _check(out, x, w)

    # --- Case 2: MNIST-like shapes exercising the tiled weight-streaming path ---
    B2, C2, H2, W2 = 2, 1, 28, 28       # size = 28 -> K = 784
    out_features2 = 4096
    x2 = jax.random.uniform(k3, (B2, C2, H2, W2), dtype=jnp.float32)
    w2 = _make_hrr_weight(k4, C2 * H2 * W2, out_features2)
    enc2 = prepare_encoder(w2)
    out2 = jax.block_until_ready(encoder_forward(x2, enc2))
    _check(out2, x2, w2)

    print("KERNEL_OK")
</pallas_src>

<mosaic_0001>
module attributes {stable_mosaic.version = 11 : i64} {
  func.func @_encoder_single_block_kernel(%arg0: memref<16x256xbf16, #tpu.memory_space<vmem>>, %arg1: memref<256x512xbf16, #tpu.memory_space<vmem>>, %arg2: memref<16x512xf32, #tpu.memory_space<vmem>>) attributes {dimension_semantics = [], scalar_prefetch = 0 : i64, scratch_operands = 0 : i64, tpu.core_type = #tpu.core_type<tc>} {
    %c0 = arith.constant 0 : index
    %c0_0 = arith.constant 0 : index
    %0 = vector.load %arg0[%c0, %c0_0] : memref<16x256xbf16, #tpu.memory_space<vmem>>, vector<16x256xbf16>
    %c0_1 = arith.constant 0 : index
    %c0_2 = arith.constant 0 : index
    %1 = vector.load %arg1[%c0_1, %c0_2] : memref<256x512xbf16, #tpu.memory_space<vmem>>, vector<256x512xbf16>
    %cst = arith.constant dense<0.000000e+00> : vector<16x512xf32>
    %2 = tpu.matmul %0, %1, %cst {dimension_numbers = #tpu.dot_dimension_numbers<[1], [0], [0], [1], [0, 0, 1, 1], [], []>} : vector<16x256xbf16>, vector<256x512xbf16>, vector<16x512xf32> -> vector<16x512xf32>
    %cst_3 = arith.constant 0.000000e+00 : f32
    %3 = vector.broadcast %cst_3 : f32 to vector<16x512xf32>
    %4 = arith.cmpf ogt, %2, %3 : vector<16x512xf32>
    %cst_4 = arith.constant 1.000000e+00 : f32
    %cst_5 = arith.constant -1.000000e+00 : f32
    %5 = vector.broadcast %cst_4 : f32 to vector<16x512xf32>
    %6 = vector.broadcast %cst_5 : f32 to vector<16x512xf32>
    %7 = arith.select %4, %5, %6 : vector<16x512xi1>, vector<16x512xf32>
    %c0_6 = arith.constant 0 : index
    %c0_7 = arith.constant 0 : index
    %8 = vector.load %arg2[%c0_6, %c0_7] : memref<16x512xf32, #tpu.memory_space<vmem>>, vector<16x512xf32>
    tpu.vector_store %arg2[%c0_6, %c0_7], %7 {strides = array<i32>} : memref<16x512xf32, #tpu.memory_space<vmem>>, vector<16x512xf32>,
    return
  }
}

</mosaic_0001>

<llo_original>
// kernel: tpu_custom_call.1
$region0: #{tpu_custom_call.1}
  #allocation0 [shape = 'u32[]', space=smem, size = 0x4, offset = 0x4, fixed_abs, tag = 'smem constant byte address 0x4 - core index']
  #allocation1 [shape = 'u32[144,128]{1,0:T(1,128)}', space=vmem, size = 0x12000, scoped, tag = 'internal scratch']
  %s0 = inlined_call_operand.hbm [shape: bf16[16,256], index: 0, kind: input, shape index: {}]
  %s1 = inlined_call_operand.hbm [shape: bf16[256,512], index: 1, kind: input, shape index: {}]
  %s2 = inlined_call_operand.hbm [shape: f32[16,512], index: 2, kind: output, shape index: {}]
  %s3 = sld [smem:[#allocation0]]
  $region26: #{tpu_custom_call.1} parent=0
    _
  %s5 = ssub.s32 1, %s3
  %s6 = scalar_select 0, %s5, %s3
  $region1: #{tpu_custom_call.1} parent=0
    #allocation2 [shape = 'u8[8192]{0}', space=vmem, size = 0x2000, scoped, tag = 'input window, operand 0, single buffered']
    #allocation3 [shape = 's32[1]{0}', space=sflag, size = 0x4, scoped, tag = 'scoped memory for tpu_custom_call.1']
    #allocation4 [shape = 's32[1]{0}', space=sflag, size = 0x4, scoped, tag = 'scoped memory for tpu_custom_call.1']
    #allocation5 [shape = 'u8[262144]{0}', space=vmem, size = 0x40000, scoped, tag = 'input window, operand 1, single buffered']
    #allocation6 [shape = 's32[1]{0}', space=sflag, size = 0x4, scoped, tag = 'scoped memory for tpu_custom_call.1']
    #allocation7 [shape = 'u8[32768]{0}', space=vmem, size = 0x8000, scoped, tag = 'output window, operand 0, single buffered']
    %7 = vsyncpa [#allocation3], 0
    %8 = vsyncpa [#allocation6], 0
    %9 = vsyncpa [#allocation4], 0
    // Predicated region
    $region2: #{tpu_custom_call.1} parent=1 // pred_check
      _
    $region3: #{tpu_custom_call.1} parent=1 // pred_check_branch
      %11 = sbr.rel (0) target = $region5
    $region4: #{tpu_custom_call.1} parent=1 // pred_region
      %s13 = ssub.s32 256, 256
      %14 = vsyncadd [#allocation3], %s13
      %s15 = sshll.u32 [#allocation2], 4
      %s16 = int_to_ptr.vmem [resolvable:$true] %s15
      %21 = dma.hbm_to_vmem [thread:$0]  %s0, 256, %s16, [#allocation3], 128, 128, 8
    $region5: #{tpu_custom_call.1} parent=1 // pred_fallthru
      _
    // Predicated region
    $region6: #{tpu_custom_call.1} parent=1 // pred_check
      _
    $region7: #{tpu_custom_call.1} parent=1 // pred_check_branch
      %23 = sbr.rel (0) target = $region9
    $region8: #{tpu_custom_call.1} parent=1 // pred_region
      %s25 = ssub.s32 8192, 8192
      %26 = vsyncadd [#allocation6], %s25
      %s27 = sshll.u32 [#allocation5], 4
      %s28 = int_to_ptr.vmem [resolvable:$true] %s27
      %33 = dma.hbm_to_vmem [thread:$0]  %s1, 8192, %s28, [#allocation6], 256, 256, 16
    $region9: #{tpu_custom_call.1} parent=1 // pred_fallthru
      _
    // Predicated region
    $region10: #{tpu_custom_call.1} parent=1 // pred_check
      _
    $region11: #{tpu_custom_call.1} parent=1 // pred_check_branch
      %35 = sbr.rel (0) target = $region13
    $region12: #{tpu_custom_call.1} parent=1 // pred_region
      %36 = dma.done [#allocation3], 256
    $region13: #{tpu_custom_call.1} parent=1 // pred_fallthru
      _
    // Predicated region
    $region14: #{tpu_custom_call.1} parent=1 // pred_check
      _
    $region15: #{tpu_custom_call.1} parent=1 // pred_check_branch
      %38 = sbr.rel (0) target = $region17
    $region16: #{tpu_custom_call.1} parent=1 // pred_region
      %39 = dma.done [#allocation6], 8192
    $region17: #{tpu_custom_call.1} parent=1 // pred_fallthru
      _
    %v40 = vld [vmem:[#allocation2] sm:$0xff]
    %v41 = vld [vmem:[#allocation2 + $0x8] sm:$0xff]
    %v42 = vld [vmem:[#allocation5] sm:$0xff]
    %v43 = vld [vmem:[#allocation5 + $0x8] sm:$0xff]
    %v44 = vld [vmem:[#allocation5 + $0x10] sm:$0xff]
    %v45 = vld [vmem:[#allocation5 + $0x18] sm:$0xff]
    %v46 = vld [vmem:[#allocation5 + $0x20] sm:$0xff]
    %v47 = vld [vmem:[#allocation5 + $0x28] sm:$0xff]
    %v48 = vld [vmem:[#allocation5 + $0x30] sm:$0xff]
    %v49 = vld [vmem:[#allocation5 + $0x38] sm:$0xff]
    %v50 = vld [vmem:[#allocation5 + $0x40] sm:$0xff]
    %v51 = vld [vmem:[#allocation5 + $0x48] sm:$0xff]
    %v52 = vld [vmem:[#allocation5 + $0x50] sm:$0xff]
    %v53 = vld [vmem:[#allocation5 + $0x58] sm:$0xff]
    %v54 = vld [vmem:[#allocation5 + $0x60] sm:$0xff]
    %v55 = vld [vmem:[#allocation5 + $0x68] sm:$0xff]
    %v56 = vld [vmem:[#allocation5 + $0x70] sm:$0xff]
    %v57 = vld [vmem:[#allocation5 + $0x78] sm:$0xff]
    %v58 = vld [vmem:[#allocation5 + $0x80] sm:$0xff]
    %v59 = vld [vmem:[#allocation5 + $0x88] sm:$0xff]
    %v60 = vld [vmem:[#allocation5 + $0x90] sm:$0xff]
    %v61 = vld [vmem:[#allocation5 + $0x98] sm:$0xff]
    %v62 = vld [vmem:[#allocation5 + $0xa0] sm:$0xff]
    %v63 = vld [vmem:[#allocation5 + $0xa8] sm:$0xff]
    %v64 = vld [vmem:[#allocation5 + $0xb0] sm:$0xff]
    %v65 = vld [vmem:[#allocation5 + $0xb8] sm:$0xff]
    %v66 = vld [vmem:[#allocation5 + $0xc0] sm:$0xff]
    %v67 = vld [vmem:[#allocation5 + $0xc8] sm:$0xff]
    %v68 = vld [vmem:[#allocation5 + $0xd0] sm:$0xff]
    %v69 = vld [vmem:[#allocation5 + $0xd8] sm:$0xff]
    %v70 = vld [vmem:[#allocation5 + $0xe0] sm:$0xff]
    %v71 = vld [vmem:[#allocation5 + $0xe8] sm:$0xff]
    %v72 = vld [vmem:[#allocation5 + $0xf0] sm:$0xff]
    %v73 = vld [vmem:[#allocation5 + $0xf8] sm:$0xff]
    %v74 = vld [vmem:[#allocation5 + $0x100] sm:$0xff]
    %v75 = vld [vmem:[#allocation5 + $0x108] sm:$0xff]
    %v76 = vld [vmem:[#allocation5 + $0x110] sm:$0xff]
    %v77 = vld [vmem:[#allocation5 + $0x118] sm:$0xff]
    %v78 = vld [vmem:[#allocation5 + $0x120] sm:$0xff]
    %v79 = vld [vmem:[#allocation5 + $0x128] sm:$0xff]
    %v80 = vld [vmem:[#allocation5 + $0x130] sm:$0xff]
    %v81 = vld [vmem:[#allocation5 + $0x138] sm:$0xff]
    %v82 = vld [vmem:[#allocation5 + $0x140] sm:$0xff]
    %v83 = vld [vmem:[#allocation5 + $0x148] sm:$0xff]
    %v84 = vld [vmem:[#allocation5 + $0x150] sm:$0xff]
    %v85 = vld [vmem:[#allocation5 + $0x158] sm:$0xff]
    %v86 = vld [vmem:[#allocation5 + $0x160] sm:$0xff]
    %v87 = vld [vmem:[#allocation5 + $0x168] sm:$0xff]
    %v88 = vld [vmem:[#allocation5 + $0x170] sm:$0xff]
    %v89 = vld [vmem:[#allocation5 + $0x178] sm:$0xff]
    %v90 = vld [vmem:[#allocation5 + $0x180] sm:$0xff]
    %v91 = vld [vmem:[#allocation5 + $0x188] sm:$0xff]
    %v92 = vld [vmem:[#allocation5 + $0x190] sm:$0xff]
    %v93 = vld [vmem:[#allocation5 + $0x198] sm:$0xff]
    %v94 = vld [vmem:[#allocation5 + $0x1a0] sm:$0xff]
    %v95 = vld [vmem:[#allocation5 + $0x1a8] sm:$0xff]
    %v96 = vld [vmem:[#allocation5 + $0x1b0] sm:$0xff]
    %v97 = vld [vmem:[#allocation5 + $0x1b8] sm:$0xff]
    %v98 = vld [vmem:[#allocation5 + $0x1c0] sm:$0xff]
    %v99 = vld [vmem:[#allocation5 + $0x1c8] sm:$0xff]
    %v100 = vld [vmem:[#allocation5 + $0x1d0] sm:$0xff]
    %v101 = vld [vmem:[#allocation5 + $0x1d8] sm:$0xff]
    %v102 = vld [vmem:[#allocation5 + $0x1e0] sm:$0xff]
    %v103 = vld [vmem:[#allocation5 + $0x1e8] sm:$0xff]
    %v104 = vld [vmem:[#allocation5 + $0x1f0] sm:$0xff]
    %v105 = vld [vmem:[#allocation5 + $0x1f8] sm:$0xff]
    %v108 = vunpack.c.l.b16 %v40
    %v109 = vunpack.c.h.b16 %v40
    %v110 = vunpack.c.l.b16 %v41
    %v111 = vunpack.c.h.b16 %v41
    %v112 = vpack.c.b16 %v110, %v108
    %v113 = vpack.c.b16 %v111, %v109
    %v180 = vunpack.c.l.b16 %v42
    %v181 = vunpack.c.h.b16 %v42
    %v182 = vunpack.c.l.b16 %v43
    %v183 = vunpack.c.h.b16 %v43
    %v184 = vunpack.c.l.b16 %v44
    %v185 = vunpack.c.h.b16 %v44
    %v186 = vunpack.c.l.b16 %v45
    %v187 = vunpack.c.h.b16 %v45
    %v188 = vunpack.c.l.b16 %v46
    %v189 = vunpack.c.h.b16 %v46
    %v190 = vunpack.c.l.b16 %v47
    %v191 = vunpack.c.h.b16 %v47
    %v192 = vunpack.c.l.b16 %v48
    %v193 = vunpack.c.h.b16 %v48
    %v194 = vunpack.c.l.b16 %v49
    %v195 = vunpack.c.h.b16 %v49
    %v196 = vunpack.c.l.b16 %v50
    %v197 = vunpack.c.h.b16 %v50
    %v198 = vunpack.c.l.b16 %v51
    %v199 = vunpack.c.h.b16 %v51
    %v200 = vunpack.c.l.b16 %v52
    %v201 = vunpack.c.h.b16 %v52
    %v202 = vunpack.c.l.b16 %v53
    %v203 = vunpack.c.h.b16 %v53
    %v204 = vunpack.c.l.b16 %v54
    %v205 = vunpack.c.h.b16 %v54
    %v206 = vunpack.c.l.b16 %v55
    %v207 = vunpack.c.h.b16 %v55
    %v208 = vunpack.c.l.b16 %v56
    %v209 = vunpack.c.h.b16 %v56
    %v210 = vunpack.c.l.b16 %v57
    %v211 = vunpack.c.h.b16 %v57
    %v212 = vunpack.c.l.b16 %v58
    %v213 = vunpack.c.h.b16 %v58
    %v214 = vunpack.c.l.b16 %v59
    %v215 = vunpack.c.h.b16 %v59
    %v216 = vunpack.c.l.b16 %v60
    %v217 = vunpack.c.h.b16 %v60
    %v218 = vunpack.c.l.b16 %v61
    %v219 = vunpack.c.h.b16 %v61
    %v220 = vunpack.c.l.b16 %v62
    %v221 = vunpack.c.h.b16 %v62
    %v222 = vunpack.c.l.b16 %v63
    %v223 = vunpack.c.h.b16 %v63
    %v224 = vunpack.c.l.b16 %v64
    %v225 = vunpack.c.h.b16 %v64
    %v226 = vunpack.c.l.b16 %v65
    %v227 = vunpack.c.h.b16 %v65
    %v228 = vunpack.c.l.b16 %v66
    %v229 = vunpack.c.h.b16 %v66
    %v230 = vunpack.c.l.b16 %v67
    %v231 = vunpack.c.h.b16 %v67
    %v232 = vunpack.c.l.b16 %v68
    %v233 = vunpack.c.h.b16 %v68
    %v234 = vunpack.c.l.b16 %v69
    %v235 = vunpack.c.h.b16 %v69
    %v236 = vunpack.c.l.b16 %v70
    %v237 = vunpack.c.h.b16 %v70
    %v238 = vunpack.c.l.b16 %v71
    %v239 = vunpack.c.h.b16 %v71
    %v240 = vunpack.c.l.b16 %v72
    %v241 = vunpack.c.h.b16 %v72
    %v242 = vunpack.c.l.b16 %v73
    %v243 = vunpack.c.h.b16 %v73
    %v244 = vunpack.c.l.b16 %v74
    %v245 = vunpack.c.h.b16 %v74
    %v246 = vunpack.c.l.b16 %v75
    %v247 = vunpack.c.h.b16 %v75
    %v248 = vunpack.c.l.b16 %v76
    %v249 = vunpack.c.h.b16 %v76
    %v250 = vunpack.c.l.b16 %v77
    %v251 = vunpack.c.h.b16 %v77
    %v252 = vunpack.c.l.b16 %v78
    %v253 = vunpack.c.h.b16 %v78
    %v254 = vunpack.c.l.b16 %v79
    %v255 = vunpack.c.h.b16 %v79
    %v256 = vunpack.c.l.b16 %v80
    %v257 = vunpack.c.h.b16 %v80
    %v258 = vunpack.c.l.b16 %v81
    %v259 = vunpack.c.h.b16 %v81
    %v260 = vunpack.c.l.b16 %v82
    %v261 = vunpack.c.h.b16 %v82
    %v262 = vunpack.c.l.b16 %v83
    %v263 = vunpack.c.h.b16 %v83
    %v264 = vunpack.c.l.b16 %v84
    %v265 = vunpack.c.h.b16 %v84
    %v266 = vunpack.c.l.b16 %v85
    %v267 = vunpack.c.h.b16 %v85
    %v268 = vunpack.c.l.b16 %v86
    %v269 = vunpack.c.h.b16 %v86
    %v270 = vunpack.c.l.b16 %v87
    %v271 = vunpack.c.h.b16 %v87
    %v272 = vunpack.c.l.b16 %v88
    %v273 = vunpack.c.h.b16 %v88
    %v274 = vunpack.c.l.b16 %v89
    %v275 = vunpack.c.h.b16 %v89
    %v276 = vunpack.c.l.b16 %v90
    %v277 = vunpack.c.h.b16 %v90
    %v278 = vunpack.c.l.b16 %v91
    %v279 = vunpack.c.h.b16 %v91
    %v280 = vunpack.c.l.b16 %v92
    %v281 = vunpack.c.h.b16 %v92
    %v282 = vunpack.c.l.b16 %v93
    %v283 = vunpack.c.h.b16 %v93
    %v284 = vunpack.c.l.b16 %v94
    %v285 = vunpack.c.h.b16 %v94
    %v286 = vunpack.c.l.b16 %v95
    %v287 = vunpack.c.h.b16 %v95
    %v288 = vunpack.c.l.b16 %v96
    %v289 = vunpack.c.h.b16 %v96
    %v290 = vunpack.c.l.b16 %v97
    %v291 = vunpack.c.h.b16 %v97
    %v292 = vunpack.c.l.b16 %v98
    %v293 = vunpack.c.h.b16 %v98
    %v294 = vunpack.c.l.b16 %v99
    %v295 = vunpack.c.h.b16 %v99
    %v296 = vunpack.c.l.b16 %v100
    %v297 = vunpack.c.h.b16 %v100
    %v298 = vunpack.c.l.b16 %v101
    %v299 = vunpack.c.h.b16 %v101
    %v300 = vunpack.c.l.b16 %v102
    %v301 = vunpack.c.h.b16 %v102
    %v302 = vunpack.c.l.b16 %v103
    %v303 = vunpack.c.h.b16 %v103
    %v304 = vunpack.c.l.b16 %v104
    %v305 = vunpack.c.h.b16 %v104
    %v306 = vunpack.c.l.b16 %v105
    %v307 = vunpack.c.h.b16 %v105
    %v308 = vpack.c.b16 %v184, %v180
    %v309 = vpack.c.b16 %v185, %v181
    %v310 = vpack.c.b16 %v186, %v182
    %v311 = vpack.c.b16 %v187, %v183
    %v312 = vpack.c.b16 %v192, %v188
    %v313 = vpack.c.b16 %v193, %v189
    %v314 = vpack.c.b16 %v194, %v190
    %v315 = vpack.c.b16 %v195, %v191
    %v316 = vpack.c.b16 %v200, %v196
    %v317 = vpack.c.b16 %v201, %v197
    %v318 = vpack.c.b16 %v202, %v198
    %v319 = vpack.c.b16 %v203, %v199
    %v320 = vpack.c.b16 %v208, %v204
    %v321 = vpack.c.b16 %v209, %v205
    %v322 = vpack.c.b16 %v210, %v206
    %v323 = vpack.c.b16 %v211, %v207
    %v324 = vpack.c.b16 %v216, %v212
    %v325 = vpack.c.b16 %v217, %v213
    %v326 = vpack.c.b16 %v218, %v214
    %v327 = vpack.c.b16 %v219, %v215
    %v328 = vpack.c.b16 %v224, %v220
    %v329 = vpack.c.b16 %v225, %v221
    %v330 = vpack.c.b16 %v226, %v222
    %v331 = vpack.c.b16 %v227, %v223
    %v332 = vpack.c.b16 %v232, %v228
    %v333 = vpack.c.b16 %v233, %v229
    %v334 = vpack.c.b16 %v234, %v230
    %v335 = vpack.c.b16 %v235, %v231
    %v336 = vpack.c.b16 %v240, %v236
    %v337 = vpack.c.b16 %v241, %v237
    %v338 = vpack.c.b16 %v242, %v238
    %v339 = vpack.c.b16 %v243, %v239
    %v340 = vpack.c.b16 %v248, %v244
    %v341 = vpack.c.b16 %v249, %v245
    %v342 = vpack.c.b16 %v250, %v246
    %v343 = vpack.c.b16 %v251, %v247
    %v344 = vpack.c.b16 %v256, %v252
    %v345 = vpack.c.b16 %v257, %v253
    %v346 = vpack.c.b16 %v258, %v254
    %v347 = vpack.c.b16 %v259, %v255
    %v348 = vpack.c.b16 %v264, %v260
    %v349 = vpack.c.b16 %v265, %v261
    %v350 = vpack.c.b16 %v266, %v262
    %v351 = vpack.c.b16 %v267, %v263
    %v352 = vpack.c.b16 %v272, %v268
    %v353 = vpack.c.b16 %v273, %v269
    %v354 = vpack.c.b16 %v274, %v270
    %v355 = vpack.c.b16 %v275, %v271
    %v356 = vpack.c.b16 %v280, %v276
    %v357 = vpack.c.b16 %v281, %v277
    %v358 = vpack.c.b16 %v282, %v278
    %v359 = vpack.c.b16 %v283, %v279
    %v360 = vpack.c.b16 %v288, %v284
    %v361 = vpack.c.b16 %v289, %v285
    %v362 = vpack.c.b16 %v290, %v286
    %v363 = vpack.c.b16 %v291, %v287
    %v364 = vpack.c.b16 %v296, %v292
    %v365 = vpack.c.b16 %v297, %v293
    %v366 = vpack.c.b16 %v298, %v294
    %v367 = vpack.c.b16 %v299, %v295
    %v368 = vpack.c.b16 %v304, %v300
    %v369 = vpack.c.b16 %v305, %v301
    %v370 = vpack.c.b16 %v306, %v302
    %v371 = vpack.c.b16 %v307, %v303
    %436 = vmatprep.subr.bf16.mxu0 %v309
    %437 = vmatpush1.bf16.msra.mxu0 %v308
    %438 = vmatprep.subr.bf16.mxu0 %v313
    %439 = vmatpush1.bf16.msra.mxu0 %v312
    %440 = vmatprep.subr.bf16.mxu0 %v317
    %441 = vmatpush1.bf16.msra.mxu0 %v316
    %442 = vmatprep.subr.bf16.mxu0 %v321
    %443 = vmatpush1.bf16.msra.mxu0 %v320
    %444 = vmatprep.subr.bf16.mxu0 %v325
    %445 = vmatpush1.bf16.msra.mxu0 %v324
    %446 = vmatprep.subr.bf16.mxu0 %v329
    %447 = vmatpush1.bf16.msra.mxu0 %v328
    %448 = vmatprep.subr.bf16.mxu0 %v333
    %449 = vmatpush1.bf16.msra.mxu0 %v332
    %450 = vmatprep.subr.bf16.mxu0 %v337
    %451 = vmatpush1.bf16.msra.mxu0 %v336
    %452 = vmatprep.subr.bf16.mxu0 %v341
    %453 = vmatpush1.bf16.msra.mxu0 %v340
    %454 = vmatprep.subr.bf16.mxu0 %v345
    %455 = vmatpush1.bf16.msra.mxu0 %v344
    %456 = vmatprep.subr.bf16.mxu0 %v349
    %457 = vmatpush1.bf16.msra.mxu0 %v348
    %458 = vmatprep.subr.bf16.mxu0 %v353
    %459 = vmatpush1.bf16.msra.mxu0 %v352
    %460 = vmatprep.subr.bf16.mxu0 %v357
    %461 = vmatpush1.bf16.msra.mxu0 %v356
    %462 = vmatprep.subr.bf16.mxu0 %v361
    %463 = vmatpush1.bf16.msra.mxu0 %v360
    %464 = vmatprep.subr.bf16.mxu0 %v365
    %465 = vmatpush1.bf16.msra.mxu0 %v364
    %466 = vmatprep.subr.bf16.mxu0 %v369
    %467 = vmatpush1.bf16.msra.mxu0 %v368
    %468 = vmatprep.mubr.bf16.mxu0 %v113
    %469 = vmatmul.mubr.bf16.gmra.mrb[0].mxu0 %v112
    %v470 = vpop.f32.mrb[0].mxu0
    %v471 = vadd.f32 0.0, %v470
    %v472 = vpop.f32.mrb[0].mxu0
    %v473 = vadd.f32 0.0, %v472
    %v474 = vpop.f32.mrb[0].mxu0
    %v475 = vadd.f32 0.0, %v474
    %v476 = vpop.f32.mrb[0].mxu0
    %v477 = vadd.f32 0.0, %v476
    %478 = vdwg.mxu0
    %479 = vmatprep.subr.bf16.mxu0 %v311
    %480 = vmatpush1.bf16.msra.mxu0 %v310
    %481 = vmatprep.subr.bf16.mxu0 %v315
    %482 = vmatpush1.bf16.msra.mxu0 %v314
    %483 = vmatprep.subr.bf16.mxu0 %v319
    %484 = vmatpush1.bf16.msra.mxu0 %v318
    %485 = vmatprep.subr.bf16.mxu0 %v323
    %486 = vmatpush1.bf16.msra.mxu0 %v322
    %487 = vmatprep.subr.bf16.mxu0 %v327
    %488 = vmatpush1.bf16.msra.mxu0 %v326
    %489 = vmatprep.subr.bf16.mxu0 %v331
    %490 = vmatpush1.bf16.msra.mxu0 %v330
    %491 = vmatprep.subr.bf16.mxu0 %v335
    %492 = vmatpush1.bf16.msra.mxu0 %v334
    %493 = vmatprep.subr.bf16.mxu0 %v339
    %494 = vmatpush1.bf16.msra.mxu0 %v338
    %495 = vmatprep.subr.bf16.mxu0 %v343
    %496 = vmatpush1.bf16.msra.mxu0 %v342
    %497 = vmatprep.subr.bf16.mxu0 %v347
    %498 = vmatpush1.bf16.msra.mxu0 %v346
    %499 = vmatprep.subr.bf16.mxu0 %v351
    %500 = vmatpush1.bf16.msra.mxu0 %v350
    %501 = vmatprep.subr.bf16.mxu0 %v355
    %502 = vmatpush1.bf16.msra.mxu0 %v354
    %503 = vmatprep.subr.bf16.mxu0 %v359
    %504 = vmatpush1.bf16.msra.mxu0 %v358
    %505 = vmatprep.subr.bf16.mxu0 %v363
    %506 = vmatpush1.bf16.msra.mxu0 %v362
    %507 = vmatprep.subr.bf16.mxu0 %v367
    %508 = vmatpush1.bf16.msra.mxu0 %v366
    %509 = vmatprep.subr.bf16.mxu0 %v371
    %510 = vmatpush1.bf16.msra.mxu0 %v370
    %511 = vmatprep.mubr.bf16.mxu0 %v113
    %512 = vmatmul.mubr.bf16.gmra.mrb[0].mxu0 %v112
    %v513 = vpop.f32.mrb[0].mxu0
    %v514 = vadd.f32 0.0, %v513
    %v515 = vpop.f32.mrb[0].mxu0
    %v516 = vadd.f32 0.0, %v515
    %v517 = vpop.f32.mrb[0].mxu0
    %v518 = vadd.f32 0.0, %v517
    %v519 = vpop.f32.mrb[0].mxu0
    %v520 = vadd.f32 0.0, %v519
    %521 = vdwg.mxu0
    %vm522 = vcmp.gt.f32.partialorder %v471, 0.0
    %vm523 = vcmp.gt.f32.partialorder %v473, 0.0
    %vm524 = vcmp.gt.f32.partialorder %v514, 0.0
    %vm525 = vcmp.gt.f32.partialorder %v516, 0.0
    %vm526 = vcmp.gt.f32.partialorder %v475, 0.0
    %vm527 = vcmp.gt.f32.partialorder %v477, 0.0
    %vm528 = vcmp.gt.f32.partialorder %v518, 0.0
    %vm529 = vcmp.gt.f32.partialorder %v520, 0.0
    %v530 = vsel %vm522, 1.0, -1.0
    %v531 = vsel %vm523, 1.0, -1.0
    %v532 = vsel %vm524, 1.0, -1.0
    %v533 = vsel %vm525, 1.0, -1.0
    %v534 = vsel %vm526, 1.0, -1.0
    %v535 = vsel %vm527, 1.0, -1.0
    %v536 = vsel %vm528, 1.0, -1.0
    %v537 = vsel %vm529, 1.0, -1.0
    %538 = vst [vmem:[#allocation7] sm:$0xff] %v530
    %539 = vst [vmem:[#allocation7 + $0x8] sm:$0xff] %v531
    %540 = vst [vmem:[#allocation7 + $0x10] sm:$0xff] %v532
    %541 = vst [vmem:[#allocation7 + $0x18] sm:$0xff] %v533
    %542 = vst [vmem:[#allocation7 + $0x20] sm:$0xff] %v534
    %543 = vst [vmem:[#allocation7 + $0x28] sm:$0xff] %v535
    %544 = vst [vmem:[#allocation7 + $0x30] sm:$0xff] %v536
    %545 = vst [vmem:[#allocation7 + $0x38] sm:$0xff] %v537
    // Predicated region
    $region18: #{tpu_custom_call.1} parent=1 // pred_check
      _
    $region19: #{tpu_custom_call.1} parent=1 // pred_check_branch
      %547 = sbr.rel (0) target = $region21
    $region20: #{tpu_custom_call.1} parent=1 // pred_region
      %s549 = ssub.s32 1024, 1024
      %550 = vsyncadd [#allocation4], %s549
      %s551 = sshll.u32 [#allocation7], 4
      %s552 = int_to_ptr.vmem [resolvable:$true] %s551
      %557 = dma.vmem_to_hbm [thread:$0]  %s552, 1024, %s2, [#allocation4], 512, 512, 32
    $region21: #{tpu_custom_call.1} parent=1 // pred_fallthru
      _
    // Predicated region
    $region22: #{tpu_custom_call.1} parent=1 // pred_check
      _
    $region23: #{tpu_custom_call.1} parent=1 // pred_check_branch
      %559 = sbr.rel (0) target = $region25
    $region24: #{tpu_custom_call.1} parent=1 // pred_region
      %560 = dma.done [#allocation4], 1024
    $region25: #{tpu_custom_call.1} parent=1 // pred_fallthru
      _
    %561 = vsyncpa [#allocation3], 1
    %562 = vsyncpa [#allocation6], 1
    %563 = vsyncpa [#allocation4], 1

</llo_original>
